<compile_context>
chip_gen: v7x
topology: tpu7x:2x2x1
jax: 0.10.0
libtpu: 0.0.40
codegen_flags: <defaults>
</compile_context>

<pallas_src>
import functools

import jax
import jax.numpy as jnp
from jax import lax
from jax.experimental import pallas as pl
from jax.experimental.pallas import tpu as pltpu

_LANE = 128
_SUBLANE = 8


def _round_up(x: int, m: int) -> int:
    return ((x + m - 1) // m) * m


def _td3_actor_kernel(*refs, n_layers, use_layernorm, hidden_dim, action_dim,
                      max_action, compute_dtype):
    """Fused MLP: [Linear(+LayerNorm)+ReLU] * n_layers -> Linear -> tanh -> scale.

    refs layout: state, (w, b[, gamma, beta]) * n_layers, wo, bo, out.
    """
    per_layer = 4 if use_layernorm else 2
    s_ref = refs[0]
    hidden_refs = refs[1:1 + n_layers * per_layer]
    wo_ref, bo_ref = refs[1 + n_layers * per_layer:3 + n_layers * per_layer]
    out_ref = refs[-1]

    x = s_ref[...]
    if x.dtype != compute_dtype:
        x = x.astype(compute_dtype)           # MXU operand cast only

    inv_n = jnp.float32(1.0 / hidden_dim)
    eps = jnp.float32(1e-5)

    for layer in range(n_layers):
        base = layer * per_layer
        w_ref = hidden_refs[base]
        b_ref = hidden_refs[base + 1]
        # MXU matmul in compute_dtype, f32 accumulation; bias add in f32.
        h = jnp.dot(x, w_ref[...], preferred_element_type=jnp.float32) + b_ref[...]

        if use_layernorm:
            g_ref = hidden_refs[base + 2]
            beta_ref = hidden_refs[base + 3]
            # Padded lanes of h are exactly zero -> plain sums over the padded
            # width are exact; one-pass variance avoids masks / extra temps.
            mean = jnp.sum(h, axis=-1, keepdims=True) * inv_n
            var = jnp.maximum(
                jnp.sum(h * h, axis=-1, keepdims=True) * inv_n - mean * mean,
                0.0)
            h = (h - mean) * lax.rsqrt(var + eps)
            # gamma/beta are zero-padded -> padded lanes return to exactly 0.
            h = h * g_ref[...] + beta_ref[...]

        h = jnp.maximum(h, 0.0)               # ReLU in f32 (VPU)
        x = h.astype(compute_dtype)           # operand for next MXU matmul

    a = jnp.dot(x, wo_ref[...], preferred_element_type=jnp.float32) + bo_ref[...]
    a = a[:, :action_dim]                     # drop padded action lanes
    out_ref[...] = (jnp.tanh(a) * jnp.float32(max_action)).astype(out_ref.dtype)


def td3_actor_forward(state, kparams, *, max_action: float = 1.0,
                      batch_tile: int = 1024):
    """state: (B, state_dim) f32. kparams: output of prepare_kernel_params."""
    state = jnp.asarray(state, jnp.float32)
    batch, state_dim = state.shape

    layers = kparams["layers"]
    n_layers = len(layers)
    use_layernorm = "gamma" in layers[0]
    hidden_dim = kparams["hidden_dim"]
    action_dim = kparams["action_dim"]
    h_pad = layers[0]["w"].shape[1]
    a_pad = kparams["wo"].shape[1]
    compute_dtype = layers[0]["w"].dtype

    # Batch tile: multiple of 8 sublanes, capped at batch_tile rows.  When the
    # whole (rounded) batch fits one step, split into 2 steps so both v7x
    # TensorCores get work on the "parallel" batch axis.
    batch_tile = max(_SUBLANE, _round_up(int(batch_tile), _SUBLANE))
    b8 = _round_up(batch, _SUBLANE)
    tb = min(batch_tile, b8)
    if b8 <= batch_tile and b8 >= 2 * _SUBLANE:
        tb = _round_up((b8 + 1) // 2, _SUBLANE)
    b_pad = _round_up(batch, tb)
    if b_pad != batch:
        state = jnp.pad(state, ((0, b_pad - batch), (0, 0)))

    args = [state]
    for layer in layers:
        args.append(layer["w"])
        args.append(layer["b"])
        if use_layernorm:
            args.append(layer["gamma"])
            args.append(layer["beta"])
    args.append(kparams["wo"])
    args.append(kparams["bo"])

    # State/out tiles walk the batch grid; params are constant-index and
    # single-buffered (second pipeline buffer would be pure VMEM waste).
    in_specs = [pl.BlockSpec((tb, state_dim), lambda i: (i, 0))]
    in_specs += [pl.BlockSpec(a.shape, lambda i: (0, 0),
                              pipeline_mode=pl.Buffered(1)) for a in args[1:]]

    # Advisory cost estimate so XLA schedules the wrapper pad/slice around us.
    param_bytes = sum(int(a.size) * a.dtype.itemsize for a in args[1:])
    flops = 2 * b_pad * (state_dim * h_pad
                         + (n_layers - 1) * h_pad * h_pad + h_pad * a_pad)
    transcendentals = b_pad * action_dim + (b_pad * n_layers if use_layernorm else 0)
    bytes_accessed = b_pad * state_dim * 4 + param_bytes + b_pad * action_dim * 4

    kernel = functools.partial(
        _td3_actor_kernel,
        n_layers=n_layers,
        use_layernorm=use_layernorm,
        hidden_dim=hidden_dim,
        action_dim=action_dim,
        max_action=float(max_action),
        compute_dtype=compute_dtype,
    )

    out = pl.pallas_call(
        kernel,
        grid=(b_pad // tb,),
        in_specs=in_specs,
        # Output block's last dim is the full (unpadded) action_dim: masked
        # stores, but ~a_pad/action_dim fewer HBM bytes written back.
        out_specs=pl.BlockSpec((tb, action_dim), lambda i: (i, 0)),
        out_shape=jax.ShapeDtypeStruct((b_pad, action_dim), jnp.float32),
        compiler_params=pltpu.CompilerParams(
            dimension_semantics=("parallel",),
            vmem_limit_bytes=48 * 1024 * 1024),
        cost_estimate=pl.CostEstimate(
            flops=int(flops),
            transcendentals=int(transcendentals),
            bytes_accessed=int(bytes_accessed)),
    )(*args)

    return out[:batch]


def init_td3_actor_params(key, state_dim, action_dim, hidden_dim,
                          n_layers: int = 2, use_layernorm: bool = False):
    """Unpadded f32 params mimicking nn.Linear U(-1/sqrt(fan_in), 1/sqrt(fan_in)).

    Weights are stored pre-transposed as (in_features, out_features).
    """
    def _lin(k, fan_in, fan_out):
        kw, kb = jax.random.split(k)
        bound = 1.0 / float(fan_in) ** 0.5
        w = jax.random.uniform(kw, (fan_in, fan_out), jnp.float32, -bound, bound)
        b = jax.random.uniform(kb, (fan_out,), jnp.float32, -bound, bound)
        return w, b

    keys = jax.random.split(key, n_layers + 1)
    layers = []
    in_dim = state_dim
    for li in range(n_layers):
        w, b = _lin(keys[li], in_dim, hidden_dim)
        entry = {"w": w, "b": b}
        if use_layernorm:
            entry["gamma"] = jnp.ones((hidden_dim,), jnp.float32)
            entry["beta"] = jnp.zeros((hidden_dim,), jnp.float32)
        layers.append(entry)
        in_dim = hidden_dim
    wo, bo = _lin(keys[n_layers], hidden_dim, action_dim)
    return {"layers": layers, "wo": wo, "bo": bo}


def prepare_kernel_params(params, *, compute_dtype=jnp.bfloat16):
    """Zero-pad hidden/action dims to lane-dense multiples of 128; cast MXU
    operands (weights) to compute_dtype, keep biases/gamma/beta in f32.

    Invariant the kernel relies on: all padded weight columns/rows, bias,
    gamma and beta entries are exactly zero.
    """
    layers_in = params["layers"]
    hidden_dim = layers_in[0]["w"].shape[1]
    action_dim = params["wo"].shape[1]
    h_pad = _round_up(hidden_dim, _LANE)
    a_pad = _round_up(action_dim, _LANE)

    def pad2(x, rows, cols):
        x = x.reshape((1, -1)) if x.ndim == 1 else x
        return jnp.pad(x, ((0, rows - x.shape[0]), (0, cols - x.shape[1])))

    layers = []
    for li, layer in enumerate(layers_in):
        w = layer["w"]
        rows = w.shape[0] if li == 0 else h_pad  # first layer keeps real state_dim
        entry = {
            "w": pad2(w, rows, h_pad).astype(compute_dtype),
            "b": pad2(layer["b"], 1, h_pad).astype(jnp.float32),
        }
        if "gamma" in layer:
            entry["gamma"] = pad2(layer["gamma"], 1, h_pad).astype(jnp.float32)
            entry["beta"] = pad2(layer["beta"], 1, h_pad).astype(jnp.float32)
        layers.append(entry)

    return {
        "layers": layers,
        "wo": pad2(params["wo"], h_pad, a_pad).astype(compute_dtype),
        "bo": pad2(params["bo"], 1, a_pad).astype(jnp.float32),
        "hidden_dim": hidden_dim,
        "action_dim": action_dim,
    }


def td3_actor_reference(state, params, *, max_action: float = 1.0,
                        compute_dtype=jnp.float32):
    """Pure-JAX reference matching the PyTorch forward (on unpadded params).

    compute_dtype mimics the kernel's MXU operand precision for tight checks.
    """
    x = jnp.asarray(state, jnp.float32)
    for layer in params["layers"]:
        h = jnp.dot(x.astype(compute_dtype), layer["w"].astype(compute_dtype),
                    preferred_element_type=jnp.float32) + layer["b"]
        if "gamma" in layer:
            mean = jnp.mean(h, axis=-1, keepdims=True)
            var = jnp.mean(jnp.square(h - mean), axis=-1, keepdims=True)
            h = (h - mean) * lax.rsqrt(var + 1e-5)
            h = h * layer["gamma"] + layer["beta"]
        x = jnp.maximum(h, 0.0)
    a = jnp.dot(x.astype(compute_dtype), params["wo"].astype(compute_dtype),
                preferred_element_type=jnp.float32) + params["bo"]
    return jnp.tanh(a) * max_action


if __name__ == "__main__":
    # Small shapes consistent with the module: batch=2, state_dim=8,
    # action_dim=4, hidden_dim=32, n_layers=2, max_action=2.0.
    batch, state_dim, action_dim, hidden_dim = 2, 8, 4, 32
    n_layers, max_action = 2, 2.0

    key = jax.random.PRNGKey(0)
    k_params, k_state = jax.random.split(key)
    state = jax.random.normal(k_state, (batch, state_dim), jnp.float32)

    for use_ln in (False, True):
        params = init_td3_actor_params(k_params, state_dim, action_dim,
                                       hidden_dim, n_layers=n_layers,
                                       use_layernorm=use_ln)
        kparams = prepare_kernel_params(params, compute_dtype=jnp.bfloat16)

        action = td3_actor_forward(state, kparams, max_action=max_action)
        action = jax.block_until_ready(action)

        ref_matched = td3_actor_reference(state, params, max_action=max_action,
                                          compute_dtype=jnp.bfloat16)
        ref_f32 = td3_actor_reference(state, params, max_action=max_action,
                                      compute_dtype=jnp.float32)

        assert action.shape == (batch, action_dim), action.shape
        assert jnp.all(jnp.abs(action) <= max_action + 1e-5)
        # Tight check against a reference using the same bf16 MXU operands.
        assert jnp.allclose(action, ref_matched, atol=5e-4, rtol=5e-4), (
            use_ln, action, ref_matched)
        # Loose sanity check against the full-f32 reference.
        assert jnp.allclose(action, ref_f32, atol=1e-1), (use_ln, action, ref_f32)

    print("KERNEL_OK")
</pallas_src>

<mosaic_0001>
module attributes {stable_mosaic.version = 11 : i64} {
  func.func @_td3_actor_kernel(%arg0: i32, %arg1: memref<8x8xf32, #tpu.memory_space<vmem>>, %arg2: memref<8x128xbf16, #tpu.memory_space<vmem>>, %arg3: memref<1x128xf32, #tpu.memory_space<vmem>>, %arg4: memref<128x128xbf16, #tpu.memory_space<vmem>>, %arg5: memref<1x128xf32, #tpu.memory_space<vmem>>, %arg6: memref<128x128xbf16, #tpu.memory_space<vmem>>, %arg7: memref<1x128xf32, #tpu.memory_space<vmem>>, %arg8: memref<8x4xf32, #tpu.memory_space<vmem>>) attributes {dimension_semantics = [#tpu.dimension_semantics<parallel>], iteration_bounds = array<i64: 1>, scalar_prefetch = 0 : i64, scratch_operands = 0 : i64, tpu.core_type = #tpu.core_type<tc>, window_params = [{transform_indices = @transform_0, window_bounds = array<i64: 8, 8>}, {pipeline_mode = #tpu.pipeline_mode<synchronous>, transform_indices = @transform_1, window_bounds = array<i64: 8, 128>}, {pipeline_mode = #tpu.pipeline_mode<synchronous>, transform_indices = @transform_2, window_bounds = array<i64: 1, 128>}, {pipeline_mode = #tpu.pipeline_mode<synchronous>, transform_indices = @transform_3, window_bounds = array<i64: 128, 128>}, {pipeline_mode = #tpu.pipeline_mode<synchronous>, transform_indices = @transform_4, window_bounds = array<i64: 1, 128>}, {pipeline_mode = #tpu.pipeline_mode<synchronous>, transform_indices = @transform_5, window_bounds = array<i64: 128, 128>}, {pipeline_mode = #tpu.pipeline_mode<synchronous>, transform_indices = @transform_6, window_bounds = array<i64: 1, 128>}, {transform_indices = @transform_7, window_bounds = array<i64: 8, 4>}]} {
    %c0 = arith.constant 0 : index
    %c0_0 = arith.constant 0 : index
    %0 = vector.load %arg1[%c0, %c0_0] : memref<8x8xf32, #tpu.memory_space<vmem>>, vector<8x8xf32>
    %1 = arith.truncf %0 : vector<8x8xf32> to vector<8x8xbf16>
    %c0_1 = arith.constant 0 : index
    %c0_2 = arith.constant 0 : index
    %2 = vector.load %arg2[%c0_1, %c0_2] : memref<8x128xbf16, #tpu.memory_space<vmem>>, vector<8x128xbf16>
    %cst = arith.constant dense<0.000000e+00> : vector<8x128xf32>
    %3 = tpu.matmul %1, %2, %cst {dimension_numbers = #tpu.dot_dimension_numbers<[1], [0], [0], [1], [0, 0, 1, 1], [], []>} : vector<8x8xbf16>, vector<8x128xbf16>, vector<8x128xf32> -> vector<8x128xf32>
    %c0_3 = arith.constant 0 : index
    %c0_4 = arith.constant 0 : index
    %4 = vector.load %arg3[%c0_3, %c0_4] : memref<1x128xf32, #tpu.memory_space<vmem>>, vector<1x128xf32>
    %5 = vector.broadcast %4 : vector<1x128xf32> to vector<8x128xf32>
    %6 = arith.addf %3, %5 : vector<8x128xf32>
    %cst_5 = arith.constant 0.000000e+00 : f32
    %7 = vector.broadcast %cst_5 : f32 to vector<8x128xf32>
    %8 = arith.maximumf %6, %7 : vector<8x128xf32>
    %9 = arith.truncf %8 : vector<8x128xf32> to vector<8x128xbf16>
    %c0_6 = arith.constant 0 : index
    %c0_7 = arith.constant 0 : index
    %10 = vector.load %arg4[%c0_6, %c0_7] : memref<128x128xbf16, #tpu.memory_space<vmem>>, vector<128x128xbf16>
    %cst_8 = arith.constant dense<0.000000e+00> : vector<8x128xf32>
    %11 = tpu.matmul %9, %10, %cst_8 {dimension_numbers = #tpu.dot_dimension_numbers<[1], [0], [0], [1], [0, 0, 1, 1], [], []>} : vector<8x128xbf16>, vector<128x128xbf16>, vector<8x128xf32> -> vector<8x128xf32>
    %c0_9 = arith.constant 0 : index
    %c0_10 = arith.constant 0 : index
    %12 = vector.load %arg5[%c0_9, %c0_10] : memref<1x128xf32, #tpu.memory_space<vmem>>, vector<1x128xf32>
    %13 = vector.broadcast %12 : vector<1x128xf32> to vector<8x128xf32>
    %14 = arith.addf %11, %13 : vector<8x128xf32>
    %cst_11 = arith.constant 0.000000e+00 : f32
    %15 = vector.broadcast %cst_11 : f32 to vector<8x128xf32>
    %16 = arith.maximumf %14, %15 : vector<8x128xf32>
    %17 = arith.truncf %16 : vector<8x128xf32> to vector<8x128xbf16>
    %c0_12 = arith.constant 0 : index
    %c0_13 = arith.constant 0 : index
    %18 = vector.load %arg6[%c0_12, %c0_13] : memref<128x128xbf16, #tpu.memory_space<vmem>>, vector<128x128xbf16>
    %cst_14 = arith.constant dense<0.000000e+00> : vector<8x128xf32>
    %19 = tpu.matmul %17, %18, %cst_14 {dimension_numbers = #tpu.dot_dimension_numbers<[1], [0], [0], [1], [0, 0, 1, 1], [], []>} : vector<8x128xbf16>, vector<128x128xbf16>, vector<8x128xf32> -> vector<8x128xf32>
    %c0_15 = arith.constant 0 : index
    %c0_16 = arith.constant 0 : index
    %20 = vector.load %arg7[%c0_15, %c0_16] : memref<1x128xf32, #tpu.memory_space<vmem>>, vector<1x128xf32>
    %21 = vector.broadcast %20 : vector<1x128xf32> to vector<8x128xf32>
    %22 = arith.addf %19, %21 : vector<8x128xf32>
    %23 = vector.extract_strided_slice %22 {offsets = [0, 0], sizes = [8, 4], strides = [1, 1]} : vector<8x128xf32> to vector<8x4xf32>
    %24 = math.tanh %23 : vector<8x4xf32>
    %cst_17 = arith.constant 2.000000e+00 : f32
    %25 = vector.broadcast %cst_17 : f32 to vector<8x4xf32>
    %26 = arith.mulf %24, %25 : vector<8x4xf32>
    %c0_18 = arith.constant 0 : index
    %c0_19 = arith.constant 0 : index
    %27 = vector.load %arg8[%c0_18, %c0_19] : memref<8x4xf32, #tpu.memory_space<vmem>>, vector<8x4xf32>
    tpu.vector_store %arg8[%c0_18, %c0_19], %26 {strides = array<i32>} : memref<8x4xf32, #tpu.memory_space<vmem>>, vector<8x4xf32>,
    return
  }
  func.func @transform_0(%arg0: i32) -> (i32, i32) {
    %c0_i32 = arith.constant 0 : i32
    %c0_i32_0 = arith.constant 0 : i32
    return %arg0, %c0_i32 : i32, i32
  }
  func.func @transform_1(%arg0: i32) -> (i32, i32) {
    %c0_i32 = arith.constant 0 : i32
    %c0_i32_0 = arith.constant 0 : i32
    %c0_i32_1 = arith.constant 0 : i32
    return %c0_i32, %c0_i32_0 : i32, i32
  }
  func.func @transform_2(%arg0: i32) -> (i32, i32) {
    %c0_i32 = arith.constant 0 : i32
    %c0_i32_0 = arith.constant 0 : i32
    %c0_i32_1 = arith.constant 0 : i32
    return %c0_i32, %c0_i32_0 : i32, i32
  }
  func.func @transform_3(%arg0: i32) -> (i32, i32) {
    %c0_i32 = arith.constant 0 : i32
    %c0_i32_0 = arith.constant 0 : i32
    %c0_i32_1 = arith.constant 0 : i32
    return %c0_i32, %c0_i32_0 : i32, i32
  }
  func.func @transform_4(%arg0: i32) -> (i32, i32) {
    %c0_i32 = arith.constant 0 : i32
    %c0_i32_0 = arith.constant 0 : i32
    %c0_i32_1 = arith.constant 0 : i32
    return %c0_i32, %c0_i32_0 : i32, i32
  }
  func.func @transform_5(%arg0: i32) -> (i32, i32) {
    %c0_i32 = arith.constant 0 : i32
    %c0_i32_0 = arith.constant 0 : i32
    %c0_i32_1 = arith.constant 0 : i32
    return %c0_i32, %c0_i32_0 : i32, i32
  }
  func.func @transform_6(%arg0: i32) -> (i32, i32) {
    %c0_i32 = arith.constant 0 : i32
    %c0_i32_0 = arith.constant 0 : i32
    %c0_i32_1 = arith.constant 0 : i32
    return %c0_i32, %c0_i32_0 : i32, i32
  }
  func.func @transform_7(%arg0: i32) -> (i32, i32) {
    %c0_i32 = arith.constant 0 : i32
    %c0_i32_0 = arith.constant 0 : i32
    return %arg0, %c0_i32 : i32, i32
  }
}

</mosaic_0001>

<llo_original>
// kernel: tpu_custom_call.1
$region0: #{tpu_custom_call.1}
  #allocation0 [shape = 'u32[]', space=smem, size = 0x4, offset = 0x4, fixed_abs, tag = 'smem constant byte address 0x4 - core index']
  #allocation1 [shape = 'u32[144,128]{1,0:T(1,128)}', space=vmem, size = 0x12000, scoped, tag = 'internal scratch']
  %s0 = inlined_call_operand.hbm [shape: f32[8,8], index: 0, kind: input, shape index: {}]
  %s1 = inlined_call_operand.hbm [shape: bf16[8,128], index: 1, kind: input, shape index: {}]
  %s2 = inlined_call_operand.vmem [shape: f32[1,128], index: 2, kind: input, shape index: {}]
  %s3 = inlined_call_operand.hbm [shape: bf16[128,128], index: 3, kind: input, shape index: {}]
  %s4 = inlined_call_operand.vmem [shape: f32[1,128], index: 4, kind: input, shape index: {}]
  %s5 = inlined_call_operand.hbm [shape: bf16[128,128], index: 5, kind: input, shape index: {}]
  %s6 = inlined_call_operand.vmem [shape: f32[1,128], index: 6, kind: input, shape index: {}]
  %s7 = inlined_call_operand.vmem [shape: f32[8,4], index: 7, kind: output, shape index: {}]
  %s8 = sld [smem:[#allocation0]]
  $region54: #{tpu_custom_call.1} parent=0
    _
  %s10 = ssub.s32 1, %s8
  %s11 = scalar_select 0, %s10, %s8
  $region1: #{tpu_custom_call.1} parent=0
    #allocation2 [shape = 'u8[4096]{0}', space=vmem, size = 0x1000, scoped, tag = 'input window, operand 0, single buffered']
    #allocation3 [shape = 's32[1]{0}', space=sflag, size = 0x4, scoped, tag = 'scoped memory for tpu_custom_call.1']
    #allocation4 [shape = 'u8[2048]{0}', space=vmem, size = 0x800, scoped, tag = 'input window, operand 1, single buffered']
    #allocation5 [shape = 's32[1]{0}', space=sflag, size = 0x4, scoped, tag = 'scoped memory for tpu_custom_call.1']
    #allocation6 [shape = 'u8[32768]{0}', space=vmem, size = 0x8000, scoped, tag = 'input window, operand 3, single buffered']
    #allocation7 [shape = 'u8[32768]{0}', space=vmem, size = 0x8000, scoped, tag = 'input window, operand 5, single buffered']
    #allocation8 [shape = 's32[1]{0}', space=sflag, size = 0x4, scoped, tag = 'scoped memory for tpu_custom_call.1']
    %12 = vsyncpa [#allocation3], 0
    %13 = vsyncpa [#allocation5], 0
    %14 = vsyncpa [#allocation8], 0
    // Predicated region
    $region2: #{tpu_custom_call.1} parent=1 // pred_check
      _
    $region3: #{tpu_custom_call.1} parent=1 // pred_check_branch
      %16 = sbr.rel (0) target = $region5
    $region4: #{tpu_custom_call.1} parent=1 // pred_region
      %s18 = ssub.s32 128, 128
      %19 = vsyncadd [#allocation3], %s18
      %s21 = sshll.u32 [#allocation2], 4
      %s22 = int_to_ptr.vmem [resolvable:$true] %s21
      %24 = dma.hbm_to_vmem [thread:$0]  %s0, 128, %s22, [#allocation3]
    $region5: #{tpu_custom_call.1} parent=1 // pred_fallthru
      _
    // Predicated region
    $region6: #{tpu_custom_call.1} parent=1 // pred_check
      _
    $region7: #{tpu_custom_call.1} parent=1 // pred_check_branch
      %26 = sbr.rel (0) target = $region9
    $region8: #{tpu_custom_call.1} parent=1 // pred_region
      %s28 = ssub.s32 64, 64
      %29 = vsyncadd [#allocation5], %s28
      %s31 = sshll.u32 [#allocation4], 4
      %s32 = int_to_ptr.vmem [resolvable:$true] %s31
      %34 = dma.hbm_to_vmem [thread:$0]  %s1, 64, %s32, [#allocation5]
    $region9: #{tpu_custom_call.1} parent=1 // pred_fallthru
      _
    // Predicated region
    $region10: #{tpu_custom_call.1} parent=1 // pred_check
      _
    $region11: #{tpu_custom_call.1} parent=1 // pred_check_branch
      %36 = sbr.rel (0) target = $region13
    $region12: #{tpu_custom_call.1} parent=1 // pred_region
      _
    $region13: #{tpu_custom_call.1} parent=1 // pred_fallthru
      _
    // Predicated region
    $region14: #{tpu_custom_call.1} parent=1 // pred_check
      _
    $region15: #{tpu_custom_call.1} parent=1 // pred_check_branch
      %38 = sbr.rel (0) target = $region17
    $region16: #{tpu_custom_call.1} parent=1 // pred_region
      %s40 = ssub.s32 1024, 1024
      %41 = vsyncadd [#allocation5], %s40
      %s42 = sshll.u32 [#allocation6], 4
      %s43 = int_to_ptr.vmem [resolvable:$true] %s42
      %48 = dma.hbm_to_vmem [thread:$0]  %s3, 1024, %s43, [#allocation5], 64, 64, 4
    $region17: #{tpu_custom_call.1} parent=1 // pred_fallthru
      _
    // Predicated region
    $region18: #{tpu_custom_call.1} parent=1 // pred_check
      _
    $region19: #{tpu_custom_call.1} parent=1 // pred_check_branch
      %50 = sbr.rel (0) target = $region21
    $region20: #{tpu_custom_call.1} parent=1 // pred_region
      _
    $region21: #{tpu_custom_call.1} parent=1 // pred_fallthru
      _
    // Predicated region
    $region22: #{tpu_custom_call.1} parent=1 // pred_check
      _
    $region23: #{tpu_custom_call.1} parent=1 // pred_check_branch
      %52 = sbr.rel (0) target = $region25
    $region24: #{tpu_custom_call.1} parent=1 // pred_region
      %s54 = ssub.s32 1024, 1024
      %55 = vsyncadd [#allocation8], %s54
      %s56 = sshll.u32 [#allocation7], 4
      %s57 = int_to_ptr.vmem [resolvable:$true] %s56
      %62 = dma.hbm_to_vmem [thread:$0]  %s5, 1024, %s57, [#allocation8], 64, 64, 4
    $region25: #{tpu_custom_call.1} parent=1 // pred_fallthru
      _
    // Predicated region
    $region26: #{tpu_custom_call.1} parent=1 // pred_check
      _
    $region27: #{tpu_custom_call.1} parent=1 // pred_check_branch
      %64 = sbr.rel (0) target = $region29
    $region28: #{tpu_custom_call.1} parent=1 // pred_region
      _
    $region29: #{tpu_custom_call.1} parent=1 // pred_fallthru
      _
    // Predicated region
    $region30: #{tpu_custom_call.1} parent=1 // pred_check
      _
    $region31: #{tpu_custom_call.1} parent=1 // pred_check_branch
      %66 = sbr.rel (0) target = $region33
    $region32: #{tpu_custom_call.1} parent=1 // pred_region
      %67 = dma.done [#allocation3], 128
    $region33: #{tpu_custom_call.1} parent=1 // pred_fallthru
      _
    // Predicated region
    $region34: #{tpu_custom_call.1} parent=1 // pred_check
      _
    $region35: #{tpu_custom_call.1} parent=1 // pred_check_branch
      %69 = sbr.rel (0) target = $region37
    $region36: #{tpu_custom_call.1} parent=1 // pred_region
      %70 = dma.done [#allocation5], 64
    $region37: #{tpu_custom_call.1} parent=1 // pred_fallthru
      _
    // Predicated region
    $region38: #{tpu_custom_call.1} parent=1 // pred_check
      _
    $region39: #{tpu_custom_call.1} parent=1 // pred_check_branch
      %72 = sbr.rel (0) target = $region41
    $region40: #{tpu_custom_call.1} parent=1 // pred_region
      %73 = dma.done [#allocation5], 1024
    $region41: #{tpu_custom_call.1} parent=1 // pred_fallthru
      _
    // Predicated region
    $region42: #{tpu_custom_call.1} parent=1 // pred_check
      _
    $region43: #{tpu_custom_call.1} parent=1 // pred_check_branch
      %75 = sbr.rel (0) target = $region45
    $region44: #{tpu_custom_call.1} parent=1 // pred_region
      %76 = dma.done [#allocation8], 1024
    $region45: #{tpu_custom_call.1} parent=1 // pred_fallthru
      _
    %v78 = vld [vmem:[#allocation2] sm:$0xff]
    %v79 = vpack.c.bf16 %v78, %v78
    %v80 = vld [vmem:[#allocation4] sm:$0xf]
    %v81 = vld [vmem:[%s2] sm:$0x1]
    %v83 = vlaneseq
    %v84 = vshrl.u32 %v83, 7
    %v85 = vsub.s32 0, %v84
    %v86 = vrot.slane %v81, %v85
    %vm88 = vcmask 64512
    %v90 = vsel %vm88, %v79, 0
    %vm92 = vcmask 1043456
    %v94 = vsel %vm92, %v80, 0
    %96 = vmatprep.subr.bf16.mxu0 0
    %97 = vmatpush1.bf16.msra.mxu0 %v94
    %98 = vmatprep.subr.bf16.mxu0 0
    %99 = vmatpush1.bf16.msra.mxu0 0
    %100 = vmatprep.subr.bf16.mxu0 0
    %101 = vmatpush1.bf16.msra.mxu0 0
    %102 = vmatprep.subr.bf16.mxu0 0
    %103 = vmatpush1.bf16.msra.mxu0 0
    %104 = vmatprep.subr.bf16.mxu0 0
    %105 = vmatpush1.bf16.msra.mxu0 0
    %106 = vmatprep.subr.bf16.mxu0 0
    %107 = vmatpush1.bf16.msra.mxu0 0
    %108 = vmatprep.subr.bf16.mxu0 0
    %109 = vmatpush1.bf16.msra.mxu0 0
    %110 = vmatprep.subr.bf16.mxu0 0
    %111 = vmatpush1.bf16.msra.mxu0 0
    %112 = vmatprep.subr.bf16.mxu0 0
    %113 = vmatpush1.bf16.msra.mxu0 0
    %114 = vmatprep.subr.bf16.mxu0 0
    %115 = vmatpush1.bf16.msra.mxu0 0
    %116 = vmatprep.subr.bf16.mxu0 0
    %117 = vmatpush1.bf16.msra.mxu0 0
    %118 = vmatprep.subr.bf16.mxu0 0
    %119 = vmatpush1.bf16.msra.mxu0 0
    %120 = vmatprep.subr.bf16.mxu0 0
    %121 = vmatpush1.bf16.msra.mxu0 0
    %122 = vmatprep.subr.bf16.mxu0 0
    %123 = vmatpush1.bf16.msra.mxu0 0
    %124 = vmatprep.subr.bf16.mxu0 0
    %125 = vmatpush1.bf16.msra.mxu0 0
    %126 = vmatprep.subr.bf16.mxu0 0
    %127 = vmatpush1.bf16.msra.mxu0 0
    %128 = vmatprep.mubr.bf16.mxu0 0
    %129 = vmatmul.mubr.bf16.gmra.mrb[0].mxu0 %v90
    %v130 = vpop.f32.mrb[0].mxu0
    %v131 = vadd.f32 %v86, %v130
    %v132 = vpop.f32.mrb[0].mxu0
    %v133 = vpop.f32.mrb[0].mxu0
    %v134 = vpop.f32.mrb[0].mxu0
    %135 = vdwg.mxu0
    %v136 = vmax.f32 %v131, 0.0
    %v137 = vpack.c.bf16 %v136, %v136
    %v138 = vld [vmem:[#allocation6] sm:$0xf]
    %v139 = vld [vmem:[#allocation6 + $0x4] sm:$0xf]
    %v140 = vld [vmem:[#allocation6 + $0x8] sm:$0xf]
    %v141 = vld [vmem:[#allocation6 + $0xc] sm:$0xf]
    %v142 = vld [vmem:[#allocation6 + $0x10] sm:$0xf]
    %v143 = vld [vmem:[#allocation6 + $0x14] sm:$0xf]
    %v144 = vld [vmem:[#allocation6 + $0x18] sm:$0xf]
    %v145 = vld [vmem:[#allocation6 + $0x1c] sm:$0xf]
    %v146 = vld [vmem:[#allocation6 + $0x20] sm:$0xf]
    %v147 = vld [vmem:[#allocation6 + $0x24] sm:$0xf]
    %v148 = vld [vmem:[#allocation6 + $0x28] sm:$0xf]
    %v149 = vld [vmem:[#allocation6 + $0x2c] sm:$0xf]
    %v150 = vld [vmem:[#allocation6 + $0x30] sm:$0xf]
    %v151 = vld [vmem:[#allocation6 + $0x34] sm:$0xf]
    %v152 = vld [vmem:[#allocation6 + $0x38] sm:$0xf]
    %v153 = vld [vmem:[#allocation6 + $0x3c] sm:$0xf]
    %v154 = vld [vmem:[%s4] sm:$0x1]
    %v156 = vlaneseq
    %v157 = vshrl.u32 %v156, 7
    %v158 = vsub.s32 0, %v157
    %v159 = vrot.slane %v154, %v158
    %v177 = vunpack.c.l.b16 %v138
    %v178 = vunpack.c.l.b16 %v139
    %v179 = vunpack.c.l.b16 %v140
    %v180 = vunpack.c.l.b16 %v141
    %v181 = vunpack.c.l.b16 %v142
    %v182 = vunpack.c.l.b16 %v143
    %v183 = vunpack.c.l.b16 %v144
    %v184 = vunpack.c.l.b16 %v145
    %v185 = vunpack.c.l.b16 %v146
    %v186 = vunpack.c.l.b16 %v147
    %v187 = vunpack.c.l.b16 %v148
    %v188 = vunpack.c.l.b16 %v149
    %v189 = vunpack.c.l.b16 %v150
    %v190 = vunpack.c.l.b16 %v151
    %v191 = vunpack.c.l.b16 %v152
    %v192 = vunpack.c.l.b16 %v153
    %v193 = vpack.c.b16 %v178, %v177
    %v194 = vpack.c.b16 %v180, %v179
    %v195 = vpack.c.b16 %v182, %v181
    %v196 = vpack.c.b16 %v184, %v183
    %v197 = vpack.c.b16 %v186, %v185
    %v198 = vpack.c.b16 %v188, %v187
    %v199 = vpack.c.b16 %v190, %v189
    %v200 = vpack.c.b16 %v192, %v191
    %209 = vmatprep.subr.bf16.mxu0 0
    %210 = vmatpush1.bf16.msra.mxu0 %v193
    %211 = vmatprep.subr.bf16.mxu0 0
    %212 = vmatpush1.bf16.msra.mxu0 %v194
    %213 = vmatprep.subr.bf16.mxu0 0
    %214 = vmatpush1.bf16.msra.mxu0 %v195
    %215 = vmatprep.subr.bf16.mxu0 0
    %216 = vmatpush1.bf16.msra.mxu0 %v196
    %217 = vmatprep.subr.bf16.mxu0 0
    %218 = vmatpush1.bf16.msra.mxu0 %v197
    %219 = vmatprep.subr.bf16.mxu0 0
    %220 = vmatpush1.bf16.msra.mxu0 %v198
    %221 = vmatprep.subr.bf16.mxu0 0
    %222 = vmatpush1.bf16.msra.mxu0 %v199
    %223 = vmatprep.subr.bf16.mxu0 0
    %224 = vmatpush1.bf16.msra.mxu0 %v200
    %225 = vmatprep.subr.bf16.mxu0 0
    %226 = vmatpush1.bf16.msra.mxu0 0
    %227 = vmatprep.subr.bf16.mxu0 0
    %228 = vmatpush1.bf16.msra.mxu0 0
    %229 = vmatprep.subr.bf16.mxu0 0
    %230 = vmatpush1.bf16.msra.mxu0 0
    %231 = vmatprep.subr.bf16.mxu0 0
    %232 = vmatpush1.bf16.msra.mxu0 0
    %233 = vmatprep.subr.bf16.mxu0 0
    %234 = vmatpush1.bf16.msra.mxu0 0
    %235 = vmatprep.subr.bf16.mxu0 0
    %236 = vmatpush1.bf16.msra.mxu0 0
    %237 = vmatprep.subr.bf16.mxu0 0
    %238 = vmatpush1.bf16.msra.mxu0 0
    %239 = vmatprep.subr.bf16.mxu0 0
    %240 = vmatpush1.bf16.msra.mxu0 0
    %241 = vmatprep.mubr.bf16.mxu0 0
    %242 = vmatmul.mubr.bf16.gmra.mrb[0].mxu0 %v137
    %v243 = vpop.f32.mrb[0].mxu0
    %v244 = vadd.f32 %v159, %v243
    %v245 = vpop.f32.mrb[0].mxu0
    %v246 = vpop.f32.mrb[0].mxu0
    %v247 = vpop.f32.mrb[0].mxu0
    %248 = vdwg.mxu0
    %v249 = vmax.f32 %v244, 0.0
    %v250 = vpack.c.bf16 %v249, %v249
    %v251 = vld [vmem:[#allocation7] sm:$0xf]
    %v252 = vld [vmem:[#allocation7 + $0x4] sm:$0xf]
    %v253 = vld [vmem:[#allocation7 + $0x8] sm:$0xf]
    %v254 = vld [vmem:[#allocation7 + $0xc] sm:$0xf]
    %v255 = vld [vmem:[#allocation7 + $0x10] sm:$0xf]
    %v256 = vld [vmem:[#allocation7 + $0x14] sm:$0xf]
    %v257 = vld [vmem:[#allocation7 + $0x18] sm:$0xf]
    %v258 = vld [vmem:[#allocation7 + $0x1c] sm:$0xf]
    %v259 = vld [vmem:[#allocation7 + $0x20] sm:$0xf]
    %v260 = vld [vmem:[#allocation7 + $0x24] sm:$0xf]
    %v261 = vld [vmem:[#allocation7 + $0x28] sm:$0xf]
    %v262 = vld [vmem:[#allocation7 + $0x2c] sm:$0xf]
    %v263 = vld [vmem:[#allocation7 + $0x30] sm:$0xf]
    %v264 = vld [vmem:[#allocation7 + $0x34] sm:$0xf]
    %v265 = vld [vmem:[#allocation7 + $0x38] sm:$0xf]
    %v266 = vld [vmem:[#allocation7 + $0x3c] sm:$0xf]
    %v267 = vld [vmem:[%s6] sm:$0x1]
    %v269 = vlaneseq
    %v270 = vshrl.u32 %v269, 7
    %v271 = vsub.s32 0, %v270
    %v272 = vrot.slane %v267, %v271
    %v290 = vunpack.c.l.b16 %v251
    %v291 = vunpack.c.l.b16 %v252
    %v292 = vunpack.c.l.b16 %v253
    %v293 = vunpack.c.l.b16 %v254
    %v294 = vunpack.c.l.b16 %v255
    %v295 = vunpack.c.l.b16 %v256
    %v296 = vunpack.c.l.b16 %v257
    %v297 = vunpack.c.l.b16 %v258
    %v298 = vunpack.c.l.b16 %v259
    %v299 = vunpack.c.l.b16 %v260
    %v300 = vunpack.c.l.b16 %v261
    %v301 = vunpack.c.l.b16 %v262
    %v302 = vunpack.c.l.b16 %v263
    %v303 = vunpack.c.l.b16 %v264
    %v304 = vunpack.c.l.b16 %v265
    %v305 = vunpack.c.l.b16 %v266
    %v306 = vpack.c.b16 %v291, %v290
    %v307 = vpack.c.b16 %v293, %v292
    %v308 = vpack.c.b16 %v295, %v294
    %v309 = vpack.c.b16 %v297, %v296
    %v310 = vpack.c.b16 %v299, %v298
    %v311 = vpack.c.b16 %v301, %v300
    %v312 = vpack.c.b16 %v303, %v302
    %v313 = vpack.c.b16 %v305, %v304
    %322 = vmatprep.subr.bf16.mxu0 0
    %323 = vmatpush1.bf16.msra.mxu0 %v306
    %324 = vmatprep.subr.bf16.mxu0 0
    %325 = vmatpush1.bf16.msra.mxu0 %v307
    %326 = vmatprep.subr.bf16.mxu0 0
    %327 = vmatpush1.bf16.msra.mxu0 %v308
    %328 = vmatprep.subr.bf16.mxu0 0
    %329 = vmatpush1.bf16.msra.mxu0 %v309
    %330 = vmatprep.subr.bf16.mxu0 0
    %331 = vmatpush1.bf16.msra.mxu0 %v310
    %332 = vmatprep.subr.bf16.mxu0 0
    %333 = vmatpush1.bf16.msra.mxu0 %v311
    %334 = vmatprep.subr.bf16.mxu0 0
    %335 = vmatpush1.bf16.msra.mxu0 %v312
    %336 = vmatprep.subr.bf16.mxu0 0
    %337 = vmatpush1.bf16.msra.mxu0 %v313
    %338 = vmatprep.subr.bf16.mxu0 0
    %339 = vmatpush1.bf16.msra.mxu0 0
    %340 = vmatprep.subr.bf16.mxu0 0
    %341 = vmatpush1.bf16.msra.mxu0 0
    %342 = vmatprep.subr.bf16.mxu0 0
    %343 = vmatpush1.bf16.msra.mxu0 0
    %344 = vmatprep.subr.bf16.mxu0 0
    %345 = vmatpush1.bf16.msra.mxu0 0
    %346 = vmatprep.subr.bf16.mxu0 0
    %347 = vmatpush1.bf16.msra.mxu0 0
    %348 = vmatprep.subr.bf16.mxu0 0
    %349 = vmatpush1.bf16.msra.mxu0 0
    %350 = vmatprep.subr.bf16.mxu0 0
    %351 = vmatpush1.bf16.msra.mxu0 0
    %352 = vmatprep.subr.bf16.mxu0 0
    %353 = vmatpush1.bf16.msra.mxu0 0
    %354 = vmatprep.mubr.bf16.mxu0 0
    %355 = vmatmul.mubr.bf16.gmra.mrb[0].mxu0 %v250
    %v356 = vpop.f32.mrb[0].mxu0
    %v357 = vadd.f32 %v272, %v356
    %v358 = vpop.f32.mrb[0].mxu0
    %v359 = vpop.f32.mrb[0].mxu0
    %v360 = vpop.f32.mrb[0].mxu0
    %361 = vdwg.mxu0
    %v362 = vtanh.pop %v357
    %v363 = vmul.f32 %v362, 2.0
    %vm364 = vcmask 31744
    %365 = vst.msk [vmem:[%s7] sm:$0xff] %vm364, %v363
    // Predicated region
    $region46: #{tpu_custom_call.1} parent=1 // pred_check
      _
    $region47: #{tpu_custom_call.1} parent=1 // pred_check_branch
      %367 = sbr.rel (0) target = $region49
    $region48: #{tpu_custom_call.1} parent=1 // pred_region
      _
    $region49: #{tpu_custom_call.1} parent=1 // pred_fallthru
      _
    // Predicated region
    $region50: #{tpu_custom_call.1} parent=1 // pred_check
      _
    $region51: #{tpu_custom_call.1} parent=1 // pred_check_branch
      %369 = sbr.rel (0) target = $region53
    $region52: #{tpu_custom_call.1} parent=1 // pred_region
      _
    $region53: #{tpu_custom_call.1} parent=1 // pred_fallthru
      _
    %370 = vsyncpa [#allocation3], 1
    %371 = vsyncpa [#allocation5], 1
    %372 = vsyncpa [#allocation8], 1

</llo_original>
